<compile_context>
chip_gen: v7x
topology: tpu7x:2x2x1
jax: 0.10.0
libtpu: 0.0.40
codegen_flags: <defaults>
</compile_context>

<pallas_src>
import math

import jax
import jax.numpy as jnp
from jax import lax
from jax.experimental import pallas as pl
from jax.experimental.pallas import tpu as pltpu

D_MODEL = 32
NUM_HEADS = 4
D_K = D_MODEL // NUM_HEADS
SEQ = 8
BATCH = 2
NEG_INF = -1e9


def mha_kernel(xcat_ref, bias_ref, wqkv_ref, wo_ref, vec_ref, o_ref):
    """Fused multi-head attention forward for all B*S rows in one invocation.

    xcat : (B*S, 3D)   [Q_in | K_in | V_in] concatenated along lanes
    bias : (B*S, B*S)  additive score bias (0 keep, -1e9 cross-batch / padded key)
    wqkv : (3D, 3D)    block_diag(Wq, Wk, Wv)
    wo   : (D, D)      output projection weight
    vec  : (8, 128)    packed bias vectors: row0[:3D] = [bq|bk|bv], row1[:D] = bo
    o    : (B*S, D)
    """
    xcat = xcat_ref[...]
    bias = bias_ref[...]
    vec = vec_ref[...]
    wo = wo_ref[...]

    # Fused QKV projection: one MXU push for all three linears.
    qkv = jnp.dot(xcat, wqkv_ref[...], preferred_element_type=jnp.float32)
    qkv = qkv + vec[0:1, 0:3 * D_MODEL]

    inv_sqrt_dk = 1.0 / math.sqrt(D_K)
    dnums = (((1,), (1,)), ((), ()))     # contract last dims: q @ k^T
    m = BATCH * SEQ

    # Per-head attention with batch folded into the row dimension; the output
    # projection is folded into the loop as an accumulation (no concatenates).
    acc = jnp.zeros((m, D_MODEL), jnp.float32)
    for h in range(NUM_HEADS):
        c = h * D_K
        qh = qkv[:, c:c + D_K]
        kh = qkv[:, D_MODEL + c:D_MODEL + c + D_K]
        vh = qkv[:, 2 * D_MODEL + c:2 * D_MODEL + c + D_K]

        s = lax.dot_general(qh, kh, dnums, preferred_element_type=jnp.float32)
        s = s * inv_sqrt_dk + bias
        # NOTE: no max-subtraction. Safe only while score magnitudes stay small
        # (0.1-scale weights) and masked entries are exactly -1e9 so exp -> 0.
        p = jnp.exp(s)
        p = p / jnp.sum(p, axis=-1, keepdims=True)   # exact divide for parity

        hv = jnp.dot(p, vh, preferred_element_type=jnp.float32)           # (m, d_k)
        acc = acc + jnp.dot(hv, wo[c:c + D_K, :],
                            preferred_element_type=jnp.float32)           # (m, D)

    o_ref[...] = (acc + vec[1:2, 0:D_MODEL]).astype(o_ref.dtype)


def mha_forward(Q, K, V, mask, params):
    """Q, K, V: (B, S, D) float32; mask: (B, 1, 1, S) float32 {0,1} or None."""
    B, S, D = Q.shape
    m = B * S

    xcat = jnp.concatenate(
        [Q.reshape(m, D), K.reshape(m, D), V.reshape(m, D)], axis=1)

    # block_diag(Wq, Wk, Wv): one fused projection matmul inside the kernel.
    wqkv = jnp.zeros((3 * D, 3 * D), jnp.float32)
    wqkv = wqkv.at[0:D, 0:D].set(params['wq'])
    wqkv = wqkv.at[D:2 * D, D:2 * D].set(params['wk'])
    wqkv = wqkv.at[2 * D:3 * D, 2 * D:3 * D].set(params['wv'])

    # Pack the small bias vectors into a single (8,128) slab (one DMA, sublane
    # rows read with cheap static slices in the kernel).
    vec = jnp.zeros((8, 128), jnp.float32)
    vec = vec.at[0, 0:3 * D].set(
        jnp.concatenate([params['bq'], params['bk'], params['bv']]))
    vec = vec.at[1, 0:D].set(params['bo'])

    # Additive (m, m) score bias: batch is folded into the row dimension, so
    # cross-batch 8x8 blocks are masked here; key-padding mask folds in too.
    row_batch = jnp.repeat(jnp.arange(B), S)                 # (m,)
    same_batch = row_batch[:, None] == row_batch[None, :]    # (m, m)
    if mask is None:
        key_ok = jnp.ones((m,), bool)
    else:
        key_ok = mask.astype(jnp.float32).reshape(m) != 0.0
    bias = jnp.where(same_batch & key_ok[None, :], 0.0, NEG_INF).astype(jnp.float32)

    out2d = pl.pallas_call(
        mha_kernel,
        out_shape=jax.ShapeDtypeStruct((m, D), jnp.float32),
        # Grid-less single invocation: whole (tiny) arrays live in VMEM.
        in_specs=[pl.BlockSpec(memory_space=pltpu.MemorySpace.VMEM)] * 5,
        out_specs=pl.BlockSpec(memory_space=pltpu.MemorySpace.VMEM),
    )(xcat, bias, wqkv, params['wo'], vec)
    return out2d.reshape(B, S, D)


def make_params(key):
    ks = jax.random.split(key, 8)
    s = 0.1
    return {
        'wq': s * jax.random.normal(ks[0], (D_MODEL, D_MODEL), jnp.float32),
        'bq': s * jax.random.normal(ks[1], (D_MODEL,), jnp.float32),
        'wk': s * jax.random.normal(ks[2], (D_MODEL, D_MODEL), jnp.float32),
        'bk': s * jax.random.normal(ks[3], (D_MODEL,), jnp.float32),
        'wv': s * jax.random.normal(ks[4], (D_MODEL, D_MODEL), jnp.float32),
        'bv': s * jax.random.normal(ks[5], (D_MODEL,), jnp.float32),
        'wo': s * jax.random.normal(ks[6], (D_MODEL, D_MODEL), jnp.float32),
        'bo': s * jax.random.normal(ks[7], (D_MODEL,), jnp.float32),
    }


def reference_mha(Q, K, V, mask, p):
    """Pure-JAX reference mirroring the PyTorch MultiHeadAttention forward."""
    B, S, D = Q.shape
    hp = jax.lax.Precision.HIGHEST

    def lin(x, w, b):
        return jnp.einsum('bsd,de->bse', x, w, precision=hp) + b

    def split(x):
        return x.reshape(B, S, NUM_HEADS, D_K).transpose(0, 2, 1, 3)

    q = split(lin(Q, p['wq'], p['bq']))
    k = split(lin(K, p['wk'], p['bk']))
    v = split(lin(V, p['wv'], p['bv']))
    scores = jnp.einsum('bhsd,bhtd->bhst', q, k, precision=hp) / math.sqrt(D_K)
    if mask is not None:
        scores = jnp.where(mask == 0.0, NEG_INF, scores)
    probs = jax.nn.softmax(scores, axis=-1)
    attn = jnp.einsum('bhst,bhtd->bhsd', probs, v, precision=hp)
    attn = attn.transpose(0, 2, 1, 3).reshape(B, S, D)
    return jnp.einsum('bsd,de->bse', attn, p['wo'], precision=hp) + p['bo']


if __name__ == "__main__":
    key = jax.random.PRNGKey(0)
    kq, kk, kv, kp = jax.random.split(key, 4)
    Q = jax.random.normal(kq, (BATCH, SEQ, D_MODEL), jnp.float32)
    K = jax.random.normal(kk, (BATCH, SEQ, D_MODEL), jnp.float32)
    V = jax.random.normal(kv, (BATCH, SEQ, D_MODEL), jnp.float32)
    # key-padding-style mask: (B, 1, 1, S); last two keys of batch 1 masked
    mask = jnp.ones((BATCH, 1, 1, SEQ), jnp.float32)
    mask = mask.at[1, :, :, -2:].set(0.0)
    params = make_params(kp)

    out = mha_forward(Q, K, V, mask, params)
    out = jax.block_until_ready(out)

    ref = reference_mha(Q, K, V, mask, params)
    assert out.shape == (BATCH, SEQ, D_MODEL)
    err = float(jnp.max(jnp.abs(out - ref)))
    assert jnp.allclose(out, ref, atol=2e-3, rtol=2e-3), err
    print("KERNEL_OK")
</pallas_src>

<mosaic_0001>
module attributes {stable_mosaic.version = 11 : i64} {
  func.func @mha_kernel(%arg0: memref<16x96xf32, #tpu.memory_space<vmem>>, %arg1: memref<16x16xf32, #tpu.memory_space<vmem>>, %arg2: memref<96x96xf32, #tpu.memory_space<vmem>>, %arg3: memref<32x32xf32, #tpu.memory_space<vmem>>, %arg4: memref<8x128xf32, #tpu.memory_space<vmem>>, %arg5: memref<16x32xf32, #tpu.memory_space<vmem>>) attributes {dimension_semantics = [], scalar_prefetch = 0 : i64, scratch_operands = 0 : i64, tpu.core_type = #tpu.core_type<tc>} {
    %c0 = arith.constant 0 : index
    %c0_0 = arith.constant 0 : index
    %0 = vector.load %arg0[%c0, %c0_0] : memref<16x96xf32, #tpu.memory_space<vmem>>, vector<16x96xf32>
    %c0_1 = arith.constant 0 : index
    %c0_2 = arith.constant 0 : index
    %1 = vector.load %arg1[%c0_1, %c0_2] : memref<16x16xf32, #tpu.memory_space<vmem>>, vector<16x16xf32>
    %c0_3 = arith.constant 0 : index
    %c0_4 = arith.constant 0 : index
    %2 = vector.load %arg4[%c0_3, %c0_4] : memref<8x128xf32, #tpu.memory_space<vmem>>, vector<8x128xf32>
    %c0_5 = arith.constant 0 : index
    %c0_6 = arith.constant 0 : index
    %3 = vector.load %arg3[%c0_5, %c0_6] : memref<32x32xf32, #tpu.memory_space<vmem>>, vector<32x32xf32>
    %c0_7 = arith.constant 0 : index
    %c0_8 = arith.constant 0 : index
    %4 = vector.load %arg2[%c0_7, %c0_8] : memref<96x96xf32, #tpu.memory_space<vmem>>, vector<96x96xf32>
    %cst = arith.constant dense<0.000000e+00> : vector<16x96xf32>
    %5 = tpu.matmul %0, %4, %cst {dimension_numbers = #tpu.dot_dimension_numbers<[1], [0], [0], [1], [0, 0, 1, 1], [], []>} : vector<16x96xf32>, vector<96x96xf32>, vector<16x96xf32> -> vector<16x96xf32>
    %6 = vector.extract_strided_slice %2 {offsets = [0, 0], sizes = [1, 96], strides = [1, 1]} : vector<8x128xf32> to vector<1x96xf32>
    %7 = vector.broadcast %6 : vector<1x96xf32> to vector<16x96xf32>
    %8 = arith.addf %5, %7 : vector<16x96xf32>
    %cst_9 = arith.constant 0.000000e+00 : f32
    %9 = vector.broadcast %cst_9 : f32 to vector<16x32xf32>
    %10 = vector.extract_strided_slice %8 {offsets = [0, 0], sizes = [16, 8], strides = [1, 1]} : vector<16x96xf32> to vector<16x8xf32>
    %11 = vector.extract_strided_slice %8 {offsets = [0, 32], sizes = [16, 8], strides = [1, 1]} : vector<16x96xf32> to vector<16x8xf32>
    %12 = vector.extract_strided_slice %8 {offsets = [0, 64], sizes = [16, 8], strides = [1, 1]} : vector<16x96xf32> to vector<16x8xf32>
    %cst_10 = arith.constant dense<0.000000e+00> : vector<16x16xf32>
    %13 = tpu.matmul %10, %11, %cst_10 {dimension_numbers = #tpu.dot_dimension_numbers<[1], [1], [0], [0], [0, 0, 1, 0], [], []>} : vector<16x8xf32>, vector<16x8xf32>, vector<16x16xf32> -> vector<16x16xf32>
    %cst_11 = arith.constant 0.353553385 : f32
    %14 = vector.broadcast %cst_11 : f32 to vector<16x16xf32>
    %15 = arith.mulf %13, %14 : vector<16x16xf32>
    %16 = arith.addf %15, %1 : vector<16x16xf32>
    %17 = math.exp %16 : vector<16x16xf32>
    %cst_12 = arith.constant dense<0.000000e+00> : vector<16xf32>
    %18 = vector.multi_reduction <add>, %17, %cst_12 [1] : vector<16x16xf32> to vector<16xf32>
    %19 = vector.shape_cast %18 : vector<16xf32> to vector<16x1xf32>
    %20 = vector.broadcast %19 : vector<16x1xf32> to vector<16x16xf32>
    %21 = arith.divf %17, %20 : vector<16x16xf32>
    %cst_13 = arith.constant dense<0.000000e+00> : vector<16x8xf32>
    %22 = tpu.matmul %21, %12, %cst_13 {dimension_numbers = #tpu.dot_dimension_numbers<[1], [0], [0], [1], [0, 0, 1, 1], [], []>} : vector<16x16xf32>, vector<16x8xf32>, vector<16x8xf32> -> vector<16x8xf32>
    %23 = vector.extract_strided_slice %3 {offsets = [0, 0], sizes = [8, 32], strides = [1, 1]} : vector<32x32xf32> to vector<8x32xf32>
    %cst_14 = arith.constant dense<0.000000e+00> : vector<16x32xf32>
    %24 = tpu.matmul %22, %23, %cst_14 {dimension_numbers = #tpu.dot_dimension_numbers<[1], [0], [0], [1], [0, 0, 1, 1], [], []>} : vector<16x8xf32>, vector<8x32xf32>, vector<16x32xf32> -> vector<16x32xf32>
    %25 = arith.addf %9, %24 : vector<16x32xf32>
    %26 = vector.extract_strided_slice %8 {offsets = [0, 8], sizes = [16, 8], strides = [1, 1]} : vector<16x96xf32> to vector<16x8xf32>
    %27 = vector.extract_strided_slice %8 {offsets = [0, 40], sizes = [16, 8], strides = [1, 1]} : vector<16x96xf32> to vector<16x8xf32>
    %28 = vector.extract_strided_slice %8 {offsets = [0, 72], sizes = [16, 8], strides = [1, 1]} : vector<16x96xf32> to vector<16x8xf32>
    %cst_15 = arith.constant dense<0.000000e+00> : vector<16x16xf32>
    %29 = tpu.matmul %26, %27, %cst_15 {dimension_numbers = #tpu.dot_dimension_numbers<[1], [1], [0], [0], [0, 0, 1, 0], [], []>} : vector<16x8xf32>, vector<16x8xf32>, vector<16x16xf32> -> vector<16x16xf32>
    %cst_16 = arith.constant 0.353553385 : f32
    %30 = vector.broadcast %cst_16 : f32 to vector<16x16xf32>
    %31 = arith.mulf %29, %30 : vector<16x16xf32>
    %32 = arith.addf %31, %1 : vector<16x16xf32>
    %33 = math.exp %32 : vector<16x16xf32>
    %cst_17 = arith.constant dense<0.000000e+00> : vector<16xf32>
    %34 = vector.multi_reduction <add>, %33, %cst_17 [1] : vector<16x16xf32> to vector<16xf32>
    %35 = vector.shape_cast %34 : vector<16xf32> to vector<16x1xf32>
    %36 = vector.broadcast %35 : vector<16x1xf32> to vector<16x16xf32>
    %37 = arith.divf %33, %36 : vector<16x16xf32>
    %cst_18 = arith.constant dense<0.000000e+00> : vector<16x8xf32>
    %38 = tpu.matmul %37, %28, %cst_18 {dimension_numbers = #tpu.dot_dimension_numbers<[1], [0], [0], [1], [0, 0, 1, 1], [], []>} : vector<16x16xf32>, vector<16x8xf32>, vector<16x8xf32> -> vector<16x8xf32>
    %39 = vector.extract_strided_slice %3 {offsets = [8, 0], sizes = [8, 32], strides = [1, 1]} : vector<32x32xf32> to vector<8x32xf32>
    %cst_19 = arith.constant dense<0.000000e+00> : vector<16x32xf32>
    %40 = tpu.matmul %38, %39, %cst_19 {dimension_numbers = #tpu.dot_dimension_numbers<[1], [0], [0], [1], [0, 0, 1, 1], [], []>} : vector<16x8xf32>, vector<8x32xf32>, vector<16x32xf32> -> vector<16x32xf32>
    %41 = arith.addf %25, %40 : vector<16x32xf32>
    %42 = vector.extract_strided_slice %8 {offsets = [0, 16], sizes = [16, 8], strides = [1, 1]} : vector<16x96xf32> to vector<16x8xf32>
    %43 = vector.extract_strided_slice %8 {offsets = [0, 48], sizes = [16, 8], strides = [1, 1]} : vector<16x96xf32> to vector<16x8xf32>
    %44 = vector.extract_strided_slice %8 {offsets = [0, 80], sizes = [16, 8], strides = [1, 1]} : vector<16x96xf32> to vector<16x8xf32>
    %cst_20 = arith.constant dense<0.000000e+00> : vector<16x16xf32>
    %45 = tpu.matmul %42, %43, %cst_20 {dimension_numbers = #tpu.dot_dimension_numbers<[1], [1], [0], [0], [0, 0, 1, 0], [], []>} : vector<16x8xf32>, vector<16x8xf32>, vector<16x16xf32> -> vector<16x16xf32>
    %cst_21 = arith.constant 0.353553385 : f32
    %46 = vector.broadcast %cst_21 : f32 to vector<16x16xf32>
    %47 = arith.mulf %45, %46 : vector<16x16xf32>
    %48 = arith.addf %47, %1 : vector<16x16xf32>
    %49 = math.exp %48 : vector<16x16xf32>
    %cst_22 = arith.constant dense<0.000000e+00> : vector<16xf32>
    %50 = vector.multi_reduction <add>, %49, %cst_22 [1] : vector<16x16xf32> to vector<16xf32>
    %51 = vector.shape_cast %50 : vector<16xf32> to vector<16x1xf32>
    %52 = vector.broadcast %51 : vector<16x1xf32> to vector<16x16xf32>
    %53 = arith.divf %49, %52 : vector<16x16xf32>
    %cst_23 = arith.constant dense<0.000000e+00> : vector<16x8xf32>
    %54 = tpu.matmul %53, %44, %cst_23 {dimension_numbers = #tpu.dot_dimension_numbers<[1], [0], [0], [1], [0, 0, 1, 1], [], []>} : vector<16x16xf32>, vector<16x8xf32>, vector<16x8xf32> -> vector<16x8xf32>
    %55 = vector.extract_strided_slice %3 {offsets = [16, 0], sizes = [8, 32], strides = [1, 1]} : vector<32x32xf32> to vector<8x32xf32>
    %cst_24 = arith.constant dense<0.000000e+00> : vector<16x32xf32>
    %56 = tpu.matmul %54, %55, %cst_24 {dimension_numbers = #tpu.dot_dimension_numbers<[1], [0], [0], [1], [0, 0, 1, 1], [], []>} : vector<16x8xf32>, vector<8x32xf32>, vector<16x32xf32> -> vector<16x32xf32>
    %57 = arith.addf %41, %56 : vector<16x32xf32>
    %58 = vector.extract_strided_slice %8 {offsets = [0, 24], sizes = [16, 8], strides = [1, 1]} : vector<16x96xf32> to vector<16x8xf32>
    %59 = vector.extract_strided_slice %8 {offsets = [0, 56], sizes = [16, 8], strides = [1, 1]} : vector<16x96xf32> to vector<16x8xf32>
    %60 = vector.extract_strided_slice %8 {offsets = [0, 88], sizes = [16, 8], strides = [1, 1]} : vector<16x96xf32> to vector<16x8xf32>
    %cst_25 = arith.constant dense<0.000000e+00> : vector<16x16xf32>
    %61 = tpu.matmul %58, %59, %cst_25 {dimension_numbers = #tpu.dot_dimension_numbers<[1], [1], [0], [0], [0, 0, 1, 0], [], []>} : vector<16x8xf32>, vector<16x8xf32>, vector<16x16xf32> -> vector<16x16xf32>
    %cst_26 = arith.constant 0.353553385 : f32
    %62 = vector.broadcast %cst_26 : f32 to vector<16x16xf32>
    %63 = arith.mulf %61, %62 : vector<16x16xf32>
    %64 = arith.addf %63, %1 : vector<16x16xf32>
    %65 = math.exp %64 : vector<16x16xf32>
    %cst_27 = arith.constant dense<0.000000e+00> : vector<16xf32>
    %66 = vector.multi_reduction <add>, %65, %cst_27 [1] : vector<16x16xf32> to vector<16xf32>
    %67 = vector.shape_cast %66 : vector<16xf32> to vector<16x1xf32>
    %68 = vector.broadcast %67 : vector<16x1xf32> to vector<16x16xf32>
    %69 = arith.divf %65, %68 : vector<16x16xf32>
    %cst_28 = arith.constant dense<0.000000e+00> : vector<16x8xf32>
    %70 = tpu.matmul %69, %60, %cst_28 {dimension_numbers = #tpu.dot_dimension_numbers<[1], [0], [0], [1], [0, 0, 1, 1], [], []>} : vector<16x16xf32>, vector<16x8xf32>, vector<16x8xf32> -> vector<16x8xf32>
    %71 = vector.extract_strided_slice %3 {offsets = [24, 0], sizes = [8, 32], strides = [1, 1]} : vector<32x32xf32> to vector<8x32xf32>
    %cst_29 = arith.constant dense<0.000000e+00> : vector<16x32xf32>
    %72 = tpu.matmul %70, %71, %cst_29 {dimension_numbers = #tpu.dot_dimension_numbers<[1], [0], [0], [1], [0, 0, 1, 1], [], []>} : vector<16x8xf32>, vector<8x32xf32>, vector<16x32xf32> -> vector<16x32xf32>
    %73 = arith.addf %57, %72 : vector<16x32xf32>
    %74 = vector.extract_strided_slice %2 {offsets = [1, 0], sizes = [1, 32], strides = [1, 1]} : vector<8x128xf32> to vector<1x32xf32>
    %75 = vector.broadcast %74 : vector<1x32xf32> to vector<16x32xf32>
    %76 = arith.addf %73, %75 : vector<16x32xf32>
    %c0_30 = arith.constant 0 : index
    %c0_31 = arith.constant 0 : index
    %77 = vector.load %arg5[%c0_30, %c0_31] : memref<16x32xf32, #tpu.memory_space<vmem>>, vector<16x32xf32>
    tpu.vector_store %arg5[%c0_30, %c0_31], %76 {strides = array<i32>} : memref<16x32xf32, #tpu.memory_space<vmem>>, vector<16x32xf32>,
    return
  }
}

</mosaic_0001>

<llo_original>
// kernel: tpu_custom_call.1
$region0: #{tpu_custom_call.1}
  #allocation0 [shape = 'u32[]', space=smem, size = 0x4, offset = 0x4, fixed_abs, tag = 'smem constant byte address 0x4 - core index']
  #allocation1 [shape = 'u32[144,128]{1,0:T(1,128)}', space=vmem, size = 0x12000, scoped, tag = 'internal scratch']
  %s0 = inlined_call_operand.hbm [shape: f32[16,96], index: 0, kind: input, shape index: {}]
  %s1 = inlined_call_operand.hbm [shape: f32[16,16], index: 1, kind: input, shape index: {}]
  %s2 = inlined_call_operand.hbm [shape: f32[96,96], index: 2, kind: input, shape index: {}]
  %s3 = inlined_call_operand.hbm [shape: f32[32,32], index: 3, kind: input, shape index: {}]
  %s4 = inlined_call_operand.vmem [shape: f32[8,128], index: 4, kind: input, shape index: {}]
  %s5 = inlined_call_operand.hbm [shape: f32[16,32], index: 5, kind: output, shape index: {}]
  %s6 = sld [smem:[#allocation0]]
  $region46: #{tpu_custom_call.1} parent=0
    _
  %s8 = ssub.s32 1, %s6
  %s9 = scalar_select 0, %s8, %s6
  $region1: #{tpu_custom_call.1} parent=0
    #allocation2 [shape = 'u8[8192]{0}', space=vmem, size = 0x2000, scoped, tag = 'input window, operand 0, single buffered']
    #allocation3 [shape = 's32[1]{0}', space=sflag, size = 0x4, scoped, tag = 'scoped memory for tpu_custom_call.1']
    #allocation4 [shape = 's32[1]{0}', space=sflag, size = 0x4, scoped, tag = 'scoped memory for tpu_custom_call.1']
    #allocation5 [shape = 'u8[8192]{0}', space=vmem, size = 0x2000, scoped, tag = 'input window, operand 1, single buffered']
    #allocation6 [shape = 's32[1]{0}', space=sflag, size = 0x4, scoped, tag = 'scoped memory for tpu_custom_call.1']
    #allocation7 [shape = 'u8[49152]{0}', space=vmem, size = 0xc000, scoped, tag = 'input window, operand 2, single buffered']
    #allocation8 [shape = 'u8[16384]{0}', space=vmem, size = 0x4000, scoped, tag = 'input window, operand 3, single buffered']
    #allocation9 [shape = 's32[1]{0}', space=sflag, size = 0x4, scoped, tag = 'scoped memory for tpu_custom_call.1']
    #allocation10 [shape = 'u8[8192]{0}', space=vmem, size = 0x2000, scoped, tag = 'output window, operand 0, single buffered']
    %10 = vsyncpa [#allocation3], 0
    %11 = vsyncpa [#allocation6], 0
    %12 = vsyncpa [#allocation9], 0
    %13 = vsyncpa [#allocation4], 0
    // Predicated region
    $region2: #{tpu_custom_call.1} parent=1 // pred_check
      _
    $region3: #{tpu_custom_call.1} parent=1 // pred_check_branch
      %15 = sbr.rel (0) target = $region5
    $region4: #{tpu_custom_call.1} parent=1 // pred_region
      %s17 = ssub.s32 256, 256
      %18 = vsyncadd [#allocation3], %s17
      %s19 = sshll.u32 [#allocation2], 4
      %s20 = int_to_ptr.vmem [resolvable:$true] %s19
      %25 = dma.hbm_to_vmem [thread:$0]  %s0, 256, %s20, [#allocation3], 128, 128, 8
    $region5: #{tpu_custom_call.1} parent=1 // pred_fallthru
      _
    // Predicated region
    $region6: #{tpu_custom_call.1} parent=1 // pred_check
      _
    $region7: #{tpu_custom_call.1} parent=1 // pred_check_branch
      %27 = sbr.rel (0) target = $region9
    $region8: #{tpu_custom_call.1} parent=1 // pred_region
      %s29 = ssub.s32 256, 256
      %30 = vsyncadd [#allocation6], %s29
      %s31 = sshll.u32 [#allocation5], 4
      %s32 = int_to_ptr.vmem [resolvable:$true] %s31
      %37 = dma.hbm_to_vmem [thread:$0]  %s1, 256, %s32, [#allocation6], 128, 128, 8
    $region9: #{tpu_custom_call.1} parent=1 // pred_fallthru
      _
    // Predicated region
    $region10: #{tpu_custom_call.1} parent=1 // pred_check
      _
    $region11: #{tpu_custom_call.1} parent=1 // pred_check_branch
      %39 = sbr.rel (0) target = $region13
    $region12: #{tpu_custom_call.1} parent=1 // pred_region
      %s41 = ssub.s32 1536, 1536
      %42 = vsyncadd [#allocation6], %s41
      %s43 = sshll.u32 [#allocation7], 4
      %s44 = int_to_ptr.vmem [resolvable:$true] %s43
      %49 = dma.hbm_to_vmem [thread:$0]  %s2, 1536, %s44, [#allocation6], 128, 128, 8
    $region13: #{tpu_custom_call.1} parent=1 // pred_fallthru
      _
    // Predicated region
    $region14: #{tpu_custom_call.1} parent=1 // pred_check
      _
    $region15: #{tpu_custom_call.1} parent=1 // pred_check_branch
      %51 = sbr.rel (0) target = $region17
    $region16: #{tpu_custom_call.1} parent=1 // pred_region
      %s53 = ssub.s32 512, 512
      %54 = vsyncadd [#allocation9], %s53
      %s55 = sshll.u32 [#allocation8], 4
      %s56 = int_to_ptr.vmem [resolvable:$true] %s55
      %61 = dma.hbm_to_vmem [thread:$0]  %s3, 512, %s56, [#allocation9], 128, 128, 8
    $region17: #{tpu_custom_call.1} parent=1 // pred_fallthru
      _
    // Predicated region
    $region18: #{tpu_custom_call.1} parent=1 // pred_check
      _
    $region19: #{tpu_custom_call.1} parent=1 // pred_check_branch
      %63 = sbr.rel (0) target = $region21
    $region20: #{tpu_custom_call.1} parent=1 // pred_region
      _
    $region21: #{tpu_custom_call.1} parent=1 // pred_fallthru
      _
    // Predicated region
    $region22: #{tpu_custom_call.1} parent=1 // pred_check
      _
    $region23: #{tpu_custom_call.1} parent=1 // pred_check_branch
      %65 = sbr.rel (0) target = $region25
    $region24: #{tpu_custom_call.1} parent=1 // pred_region
      %66 = dma.done [#allocation3], 256
    $region25: #{tpu_custom_call.1} parent=1 // pred_fallthru
      _
    // Predicated region
    $region26: #{tpu_custom_call.1} parent=1 // pred_check
      _
    $region27: #{tpu_custom_call.1} parent=1 // pred_check_branch
      %68 = sbr.rel (0) target = $region29
    $region28: #{tpu_custom_call.1} parent=1 // pred_region
      %69 = dma.done [#allocation6], 256
    $region29: #{tpu_custom_call.1} parent=1 // pred_fallthru
      _
    // Predicated region
    $region30: #{tpu_custom_call.1} parent=1 // pred_check
      _
    $region31: #{tpu_custom_call.1} parent=1 // pred_check_branch
      %71 = sbr.rel (0) target = $region33
    $region32: #{tpu_custom_call.1} parent=1 // pred_region
      %72 = dma.done [#allocation6], 1536
    $region33: #{tpu_custom_call.1} parent=1 // pred_fallthru
      _
    // Predicated region
    $region34: #{tpu_custom_call.1} parent=1 // pred_check
      _
    $region35: #{tpu_custom_call.1} parent=1 // pred_check_branch
      %74 = sbr.rel (0) target = $region37
    $region36: #{tpu_custom_call.1} parent=1 // pred_region
      %75 = dma.done [#allocation9], 512
    $region37: #{tpu_custom_call.1} parent=1 // pred_fallthru
      _
    %v76 = vld [vmem:[#allocation2] sm:$0xff]
    %v77 = vld [vmem:[#allocation2 + $0x8] sm:$0xff]
    %v78 = vld [vmem:[#allocation5] sm:$0xff]
    %v79 = vld [vmem:[#allocation5 + $0x8] sm:$0xff]
    %v80 = vld [vmem:[%s4] sm:$0xff]
    %v81 = vld [vmem:[#allocation8] sm:$0xff]
    %v82 = vld [vmem:[#allocation8 + $0x8] sm:$0xff]
    %v83 = vld [vmem:[#allocation8 + $0x10] sm:$0xff]
    %v84 = vld [vmem:[#allocation8 + $0x18] sm:$0xff]
    %v85 = vld [vmem:[#allocation7] sm:$0xff]
    %v86 = vld [vmem:[#allocation7 + $0x8] sm:$0xff]
    %v87 = vld [vmem:[#allocation7 + $0x10] sm:$0xff]
    %v88 = vld [vmem:[#allocation7 + $0x18] sm:$0xff]
    %v89 = vld [vmem:[#allocation7 + $0x20] sm:$0xff]
    %v90 = vld [vmem:[#allocation7 + $0x28] sm:$0xff]
    %v91 = vld [vmem:[#allocation7 + $0x30] sm:$0xff]
    %v92 = vld [vmem:[#allocation7 + $0x38] sm:$0xff]
    %v93 = vld [vmem:[#allocation7 + $0x40] sm:$0xff]
    %v94 = vld [vmem:[#allocation7 + $0x48] sm:$0xff]
    %v95 = vld [vmem:[#allocation7 + $0x50] sm:$0xff]
    %v96 = vld [vmem:[#allocation7 + $0x58] sm:$0xff]
    %v97 = vlaneseq
    %v98 = vshrl.u32 %v97, 7
    %v99 = vsub.s32 0, %v98
    %v100 = vrot.slane %v80, %v99
    %vm101 = vcmask 785408
    %v103 = vsel %vm101, %v76, 0
    %v106 = vsel %vm101, %v77, 0
    %108 = vmatprep.subr.mxu0 0.0
    %109 = vmatpush1.msra.mxu0 %v85
    %110 = vmatprep.subr.mxu0 0.0
    %111 = vmatpush1.msra.mxu0 %v86
    %112 = vmatprep.subr.mxu0 0.0
    %113 = vmatpush1.msra.mxu0 %v87
    %114 = vmatprep.subr.mxu0 0.0
    %115 = vmatpush1.msra.mxu0 %v88
    %116 = vmatprep.subr.mxu0 0.0
    %117 = vmatpush1.msra.mxu0 %v89
    %118 = vmatprep.subr.mxu0 0.0
    %119 = vmatpush1.msra.mxu0 %v90
    %120 = vmatprep.subr.mxu0 0.0
    %121 = vmatpush1.msra.mxu0 %v91
    %122 = vmatprep.subr.mxu0 0.0
    %123 = vmatpush1.msra.mxu0 %v92
    %124 = vmatprep.subr.mxu0 0.0
    %125 = vmatpush1.msra.mxu0 %v93
    %126 = vmatprep.subr.mxu0 0.0
    %127 = vmatpush1.msra.mxu0 %v94
    %128 = vmatprep.subr.mxu0 0.0
    %129 = vmatpush1.msra.mxu0 %v95
    %130 = vmatprep.subr.mxu0 0.0
    %131 = vmatpush1.msra.mxu0 %v96
    %132 = vmatprep.subr.mxu0 0.0
    %133 = vmatpush1.msra.mxu0 0.0
    %134 = vmatprep.subr.mxu0 0.0
    %135 = vmatpush1.msra.mxu0 0.0
    %136 = vmatprep.subr.mxu0 0.0
    %137 = vmatpush1.msra.mxu0 0.0
    %138 = vmatprep.subr.mxu0 0.0
    %139 = vmatpush1.msra.mxu0 0.0
    %140 = vmatprep.subr.mxu0 0.0
    %141 = vmatpush1.msra.mxu0 0.0
    %142 = vmatprep.subr.mxu0 0.0
    %143 = vmatpush1.msra.mxu0 0.0
    %144 = vmatprep.subr.mxu0 0.0
    %145 = vmatpush1.msra.mxu0 0.0
    %146 = vmatprep.subr.mxu0 0.0
    %147 = vmatpush1.msra.mxu0 0.0
    %148 = vmatprep.subr.mxu0 0.0
    %149 = vmatpush1.msra.mxu0 0.0
    %150 = vmatprep.subr.mxu0 0.0
    %151 = vmatpush1.msra.mxu0 0.0
    %152 = vmatprep.subr.mxu0 0.0
    %153 = vmatpush1.msra.mxu0 0.0
    %154 = vmatprep.subr.mxu0 0.0
    %155 = vmatpush1.msra.mxu0 0.0
    %156 = vmatprep.subr.mxu0 0.0
    %157 = vmatpush1.msra.mxu0 0.0
    %158 = vmatprep.subr.mxu0 0.0
    %159 = vmatpush1.msra.mxu0 0.0
    %160 = vmatprep.subr.mxu0 0.0
    %161 = vmatpush1.msra.mxu0 0.0
    %162 = vmatprep.subr.mxu0 0.0
    %163 = vmatpush1.msra.mxu0 0.0
    %164 = vmatprep.subr.mxu0 0.0
    %165 = vmatpush1.msra.mxu0 0.0
    %166 = vmatprep.subr.mxu0 0.0
    %167 = vmatpush1.msra.mxu0 0.0
    %168 = vmatprep.subr.mxu0 0.0
    %169 = vmatpush1.msra.mxu0 0.0
    %170 = vmatprep.subr.mxu0 0.0
    %171 = vmatpush1.msra.mxu0 0.0
    %172 = vmatprep.mubr.f32.mxu0 0.0
    %173 = vmatmul.mubr.f32.gmra.mrb[0].mxu0 %v103
    %v174 = vpop.f32.mrb[0].mxu0
    %v175 = vadd.f32 %v100, %v174
    %v176 = vpop.f32.mrb[0].mxu0
    %177 = vmatprep.mubr.f32.mxu0 0.0
    %178 = vmatmul.mubr.f32.gmra.mrb[0].mxu0 %v106
    %v179 = vpop.f32.mrb[0].mxu0
    %v180 = vadd.f32 %v100, %v179
    %v181 = vpop.f32.mrb[0].mxu0
    %182 = vdwg.mxu0
    %185 = vrot.lane.b32.xlu0 %v175, 96
    %v186 = vpop.permute.xlu0 %185
    %187 = vrot.lane.b32.xlu0 %v180, 96
    %v188 = vpop.permute.xlu0 %187
    %vm189 = vcmask 64512
    %v190 = vsel %vm189, %v175, 0
    %v192 = vsel %vm189, %v180, 0
    %v194 = vsel %vm189, %v186, 0
    %v196 = vsel %vm189, %v188, 0
    %198 = vmatprep.subr.mxu0 0.0
    %199 = vmatpush1.xpose.msra.mxu0 %v194
    %200 = vmatprep.subr.mxu0 0.0
    %201 = vmatpush1.xpose.msra.mxu0 %v196
    %202 = vmatprep.subr.mxu0 0.0
    %203 = vmatpush1.xpose.msra.mxu0 0.0
    %204 = vmatprep.subr.mxu0 0.0
    %205 = vmatpush1.xpose.msra.mxu0 0.0
    %206 = vmatprep.subr.mxu0 0.0
    %207 = vmatpush1.xpose.msra.mxu0 0.0
    %208 = vmatprep.subr.mxu0 0.0
    %209 = vmatpush1.xpose.msra.mxu0 0.0
    %210 = vmatprep.subr.mxu0 0.0
    %211 = vmatpush1.xpose.msra.mxu0 0.0
    %212 = vmatprep.subr.mxu0 0.0
    %213 = vmatpush1.xpose.msra.mxu0 0.0
    %214 = vmatprep.subr.mxu0 0.0
    %215 = vmatpush1.xpose.msra.mxu0 0.0
    %216 = vmatprep.subr.mxu0 0.0
    %217 = vmatpush1.xpose.msra.mxu0 0.0
    %218 = vmatprep.subr.mxu0 0.0
    %219 = vmatpush1.xpose.msra.mxu0 0.0
    %220 = vmatprep.subr.mxu0 0.0
    %221 = vmatpush1.xpose.msra.mxu0 0.0
    %222 = vmatprep.subr.mxu0 0.0
    %223 = vmatpush1.xpose.msra.mxu0 0.0
    %224 = vmatprep.subr.mxu0 0.0
    %225 = vmatpush1.xpose.msra.mxu0 0.0
    %226 = vmatprep.subr.mxu0 0.0
    %227 = vmatpush1.xpose.msra.mxu0 0.0
    %228 = vmatprep.subr.mxu0 0.0
    %229 = vmatpush1.xpose.msra.mxu0 0.0
    %230 = vmatprep.subr.mxu0 0.0
    %231 = vmatpush1.xpose.msra.mxu0 0.0
    %232 = vmatprep.subr.mxu0 0.0
    %233 = vmatpush1.xpose.msra.mxu0 0.0
    %234 = vmatprep.subr.mxu0 0.0
    %235 = vmatpush1.xpose.msra.mxu0 0.0
    %236 = vmatprep.subr.mxu0 0.0
    %237 = vmatpush1.xpose.msra.mxu0 0.0
    %238 = vmatprep.subr.mxu0 0.0
    %239 = vmatpush1.xpose.msra.mxu0 0.0
    %240 = vmatprep.subr.mxu0 0.0
    %241 = vmatpush1.xpose.msra.mxu0 0.0
    %242 = vmatprep.subr.mxu0 0.0
    %243 = vmatpush1.xpose.msra.mxu0 0.0
    %244 = vmatprep.subr.mxu0 0.0
    %245 = vmatpush1.xpose.msra.mxu0 0.0
    %246 = vmatprep.subr.mxu0 0.0
    %247 = vmatpush1.xpose.msra.mxu0 0.0
    %248 = vmatprep.subr.mxu0 0.0
    %249 = vmatpush1.xpose.msra.mxu0 0.0
    %250 = vmatprep.subr.mxu0 0.0
    %251 = vmatpush1.xpose.msra.mxu0 0.0
    %252 = vmatprep.subr.mxu0 0.0
    %253 = vmatpush1.xpose.msra.mxu0 0.0
    %254 = vmatprep.subr.mxu0 0.0
    %255 = vmatpush1.xpose.msra.mxu0 0.0
    %256 = vmatprep.subr.mxu0 0.0
    %257 = vmatpush1.xpose.msra.mxu0 0.0
    %258 = vmatprep.subr.mxu0 0.0
    %259 = vmatpush1.xpose.msra.mxu0 0.0
    %260 = vmatprep.subr.mxu0 0.0
    %261 = vmatpush1.xpose.msra.mxu0 0.0
    %262 = vmatprep.mubr.f32.mxu0 0.0
    %263 = vmatmul.mubr.f32.gmra.mrb[0].mxu0 %v190
    %v264 = vpop.f32.mrb[0].mxu0
    %v265 = vadd.f32 0.0, %v264
    %v266 = vpop.f32.mrb[0].mxu0
    %267 = vmatprep.mubr.f32.mxu0 0.0
    %268 = vmatmul.mubr.f32.gmra.mrb[0].mxu0 %v192
    %v269 = vpop.f32.mrb[0].mxu0
    %v270 = vadd.f32 0.0, %v269
    %v271 = vpop.f32.mrb[0].mxu0
    %272 = vdwg.mxu0
    %v273 = vmul.f32 %v265, 0.35355338
    %v274 = vmul.f32 %v270, 0.35355338
    %v275 = vadd.f32 %v273, %v78
    %v276 = vadd.f32 %v274, %v79
    %v277 = vmul.f32 %v275, 1.442695
    %v278 = vpow.pop %v277
    %v279 = vmul.f32 %v276, 1.442695
    %v280 = vpow.pop %v279
    %vm281 = vcmask 130048
    %v282 = vsel %vm281, %v278, 0.0
    %283 = vadd.xlane.f32.xlu0 %v282
    %v284 = vpop.xlane.xlu0 %283
    %v285 = vsel %vm281, %v280, 0.0
    %286 = vadd.xlane.f32.xlu0 %v285
    %v287 = vpop.xlane.xlu0 %286
    %v288 = vrcp.pop %v284
    %v289 = vmul.f32 %v278, %v288
    %v290 = vrcp.pop %v287
    %v291 = vmul.f32 %v280, %v290
    %292 = vrot.lane.b32.xlu0 %v175, 64
    %v293 = vpop.permute.xlu0 %292
    %294 = vrot.lane.b32.xlu0 %v180, 64
    %v295 = vpop.permute.xlu0 %294
    %v299 = vsel %vm281, %v289, 0
    %v302 = vsel %vm281, %v291, 0
    %304 = vmatprep.subr.mxu0 0.0
    %305 = vmatpush1.msra.mxu0 %v293
    %306 = vmatprep.subr.mxu0 0.0
    %307 = vmatpush1.msra.mxu0 %v295
    %308 = vmatprep.subr.mxu0 0.0
    %309 = vmatpush1.msra.mxu0 0.0
    %310 = vmatprep.subr.mxu0 0.0
    %311 = vmatpush1.msra.mxu0 0.0
    %312 = vmatprep.subr.mxu0 0.0
    %313 = vmatpush1.msra.mxu0 0.0
    %314 = vmatprep.subr.mxu0 0.0
    %315 = vmatpush1.msra.mxu0 0.0
    %316 = vmatprep.subr.mxu0 0.0
    %317 = vmatpush1.msra.mxu0 0.0
    %318 = vmatprep.subr.mxu0 0.0
    %319 = vmatpush1.msra.mxu0 0.0
    %320 = vmatprep.subr.mxu0 0.0
    %321 = vmatpush1.msra.mxu0 0.0
    %322 = vmatprep.subr.mxu0 0.0
    %323 = vmatpush1.msra.mxu0 0.0
    %324 = vmatprep.subr.mxu0 0.0
    %325 = vmatpush1.msra.mxu0 0.0
    %326 = vmatprep.subr.mxu0 0.0
    %327 = vmatpush1.msra.mxu0 0.0
    %328 = vmatprep.subr.mxu0 0.0
    %329 = vmatpush1.msra.mxu0 0.0
    %330 = vmatprep.subr.mxu0 0.0
    %331 = vmatpush1.msra.mxu0 0.0
    %332 = vmatprep.subr.mxu0 0.0
    %333 = vmatpush1.msra.mxu0 0.0
    %334 = vmatprep.subr.mxu0 0.0
    %335 = vmatpush1.msra.mxu0 0.0
    %336 = vmatprep.subr.mxu0 0.0
    %337 = vmatpush1.msra.mxu0 0.0
    %338 = vmatprep.subr.mxu0 0.0
    %339 = vmatpush1.msra.mxu0 0.0
    %340 = vmatprep.subr.mxu0 0.0
    %341 = vmatpush1.msra.mxu0 0.0
    %342 = vmatprep.subr.mxu0 0.0
    %343 = vmatpush1.msra.mxu0 0.0
    %344 = vmatprep.subr.mxu0 0.0
    %345 = vmatpush1.msra.mxu0 0.0
    %346 = vmatprep.subr.mxu0 0.0
    %347 = vmatpush1.msra.mxu0 0.0
    %348 = vmatprep.subr.mxu0 0.0
    %349 = vmatpush1.msra.mxu0 0.0
    %350 = vmatprep.subr.mxu0 0.0
    %351 = vmatpush1.msra.mxu0 0.0
    %352 = vmatprep.subr.mxu0 0.0
    %353 = vmatpush1.msra.mxu0 0.0
    %354 = vmatprep.subr.mxu0 0.0
    %355 = vmatpush1.msra.mxu0 0.0
    %356 = vmatprep.subr.mxu0 0.0
    %357 = vmatpush1.msra.mxu0 0.0
    %358 = vmatprep.subr.mxu0 0.0
    %359 = vmatpush1.msra.mxu0 0.0
    %360 = vmatprep.subr.mxu0 0.0
    %361 = vmatpush1.msra.mxu0 0.0
    %362 = vmatprep.subr.mxu0 0.0
    %363 = vmatpush1.msra.mxu0 0.0
    %364 = vmatprep.subr.mxu0 0.0
    %365 = vmatpush1.msra.mxu0 0.0
    %366 = vmatprep.subr.mxu0 0.0
    %367 = vmatpush1.msra.mxu0 0.0
    %368 = vmatprep.mubr.f32.mxu0 0.0
    %369 = vmatmul.mubr.f32.gmra.mrb[0].mxu0 %v299
    %v370 = vpop.f32.mrb[0].mxu0
    %v371 = vadd.f32 0.0, %v370
    %v372 = vpop.f32.mrb[0].mxu0
    %373 = vmatprep.mubr.f32.mxu0 0.0
    %374 = vmatmul.mubr.f32.gmra.mrb[0].mxu0 %v302
    %v375 = vpop.f32.mrb[0].mxu0
    %v376 = vadd.f32 0.0, %v375
    %v377 = vpop.f32.mrb[0].mxu0
    %378 = vdwg.mxu0
    %379 = vrot.lane.b32.xlu0 %v175, 120
    %v380 = vpop.permute.xlu0 %379
    %381 = vrot.lane.b32.xlu0 %v180, 120
    %v382 = vpop.permute.xlu0 %381
    %383 = vrot.lane.b32.xlu0 %v175, 88
    %v384 = vpop.permute.xlu0 %383
    %385 = vrot.lane.b32.xlu0 %v180, 88
    %v386 = vpop.permute.xlu0 %385
    %v387 = vsel %vm189, %v380, 0
    %v389 = vsel %vm189, %v382, 0
    %v391 = vsel %vm189, %v384, 0
    %v393 = vsel %vm189, %v386, 0
    %395 = vmatprep.subr.mxu0 0.0
    %396 = vmatpush1.xpose.msra.mxu0 %v391
    %397 = vmatprep.subr.mxu0 0.0
    %398 = vmatpush1.xpose.msra.mxu0 %v393
    %399 = vmatprep.subr.mxu0 0.0
    %400 = vmatpush1.xpose.msra.mxu0 0.0
    %401 = vmatprep.subr.mxu0 0.0
    %402 = vmatpush1.xpose.msra.mxu0 0.0
    %403 = vmatprep.subr.mxu0 0.0
    %404 = vmatpush1.xpose.msra.mxu0 0.0
    %405 = vmatprep.subr.mxu0 0.0
    %406 = vmatpush1.xpose.msra.mxu0 0.0
    %407 = vmatprep.subr.mxu0 0.0
    %408 = vmatpush1.xpose.msra.mxu0 0.0
    %409 = vmatprep.subr.mxu0 0.0
    %410 = vmatpush1.xpose.msra.mxu0 0.0
    %411 = vmatprep.subr.mxu0 0.0
    %412 = vmatpush1.xpose.msra.mxu0 0.0
    %413 = vmatprep.subr.mxu0 0.0
    %414 = vmatpush1.xpose.msra.mxu0 0.0
    %415 = vmatprep.subr.mxu0 0.0
    %416 = vmatpush1.xpose.msra.mxu0 0.0
    %417 = vmatprep.subr.mxu0 0.0
    %418 = vmatpush1.xpose.msra.mxu0 0.0
    %419 = vmatprep.subr.mxu0 0.0
    %420 = vmatpush1.xpose.msra.mxu0 0.0
    %421 = vmatprep.subr.mxu0 0.0
    %422 = vmatpush1.xpose.msra.mxu0 0.0
    %423 = vmatprep.subr.mxu0 0.0
    %424 = vmatpush1.xpose.msra.mxu0 0.0
    %425 = vmatprep.subr.mxu0 0.0
    %426 = vmatpush1.xpose.msra.mxu0 0.0
    %427 = vmatprep.subr.mxu0 0.0
    %428 = vmatpush1.xpose.msra.mxu0 0.0
    %429 = vmatprep.subr.mxu0 0.0
    %430 = vmatpush1.xpose.msra.mxu0 0.0
    %431 = vmatprep.subr.mxu0 0.0
    %432 = vmatpush1.xpose.msra.mxu0 0.0
    %433 = vmatprep.subr.mxu0 0.0
    %434 = vmatpush1.xpose.msra.mxu0 0.0
    %435 = vmatprep.subr.mxu0 0.0
    %436 = vmatpush1.xpose.msra.mxu0 0.0
    %437 = vmatprep.subr.mxu0 0.0
    %438 = vmatpush1.xpose.msra.mxu0 0.0
    %439 = vmatprep.subr.mxu0 0.0
    %440 = vmatpush1.xpose.msra.mxu0 0.0
    %441 = vmatprep.subr.mxu0 0.0
    %442 = vmatpush1.xpose.msra.mxu0 0.0
    %443 = vmatprep.subr.mxu0 0.0
    %444 = vmatpush1.xpose.msra.mxu0 0.0
    %445 = vmatprep.subr.mxu0 0.0
    %446 = vmatpush1.xpose.msra.mxu0 0.0
    %447 = vmatprep.subr.mxu0 0.0
    %448 = vmatpush1.xpose.msra.mxu0 0.0
    %449 = vmatprep.subr.mxu0 0.0
    %450 = vmatpush1.xpose.msra.mxu0 0.0
    %451 = vmatprep.subr.mxu0 0.0
    %452 = vmatpush1.xpose.msra.mxu0 0.0
    %453 = vmatprep.subr.mxu0 0.0
    %454 = vmatpush1.xpose.msra.mxu0 0.0
    %455 = vmatprep.subr.mxu0 0.0
    %456 = vmatpush1.xpose.msra.mxu0 0.0
    %457 = vmatprep.subr.mxu0 0.0
    %458 = vmatpush1.xpose.msra.mxu0 0.0
    %459 = vmatprep.mubr.f32.mxu0 0.0
    %460 = vmatmul.mubr.f32.gmra.mrb[0].mxu0 %v387
    %v461 = vpop.f32.mrb[0].mxu0
    %v462 = vadd.f32 0.0, %v461
    %v463 = vpop.f32.mrb[0].mxu0
    %464 = vmatprep.mubr.f32.mxu0 0.0
    %465 = vmatmul.mubr.f32.gmra.mrb[0].mxu0 %v389
    %v466 = vpop.f32.mrb[0].mxu0
    %v467 = vadd.f32 0.0, %v466
    %v468 = vpop.f32.mrb[0].mxu0
    %469 = vdwg.mxu0
    %v470 = vmul.f32 %v462, 0.35355338
    %v471 = vmul.f32 %v467, 0.35355338
    %v472 = vadd.f32 %v470, %v78
    %v473 = vadd.f32 %v471, %v79
    %v474 = vmul.f32 %v472, 1.442695
    %v475 = vpow.pop %v474
    %v476 = vmul.f32 %v473, 1.442695
    %v477 = vpow.pop %v476
    %v478 = vsel %vm281, %v475, 0.0
    %479 = vadd.xlane.f32.xlu0 %v478
    %v480 = vpop.xlane.xlu0 %479
    %v481 = vsel %vm281, %v477, 0.0
    %482 = vadd.xlane.f32.xlu0 %v481
    %v483 = vpop.xlane.xlu0 %482
    %v484 = vrcp.pop %v480
    %v485 = vmul.f32 %v475, %v484
    %v486 = vrcp.pop %v483
    %v487 = vmul.f32 %v477, %v486
    %488 = vrot.lane.b32.xlu0 %v175, 56
    %v489 = vpop.permute.xlu0 %488
    %490 = vrot.lane.b32.xlu0 %v180, 56
    %v491 = vpop.permute.xlu0 %490
    %v495 = vsel %vm281, %v485, 0
    %v498 = vsel %vm281, %v487, 0
    %500 = vmatprep.subr.mxu0 0.0
    %501 = vmatpush1.msra.mxu0 %v489
    %502 = vmatprep.subr.mxu0 0.0
    %503 = vmatpush1.msra.mxu0 %v491
    %504 = vmatprep.subr.mxu0 0.0
    %505 = vmatpush1.msra.mxu0 0.0
    %506 = vmatprep.subr.mxu0 0.0
    %507 = vmatpush1.msra.mxu0 0.0
    %508 = vmatprep.subr.mxu0 0.0
    %509 = vmatpush1.msra.mxu0 0.0
    %510 = vmatprep.subr.mxu0 0.0
    %511 = vmatpush1.msra.mxu0 0.0
    %512 = vmatprep.subr.mxu0 0.0
    %513 = vmatpush1.msra.mxu0 0.0
    %514 = vmatprep.subr.mxu0 0.0
    %515 = vmatpush1.msra.mxu0 0.0
    %516 = vmatprep.subr.mxu0 0.0
    %517 = vmatpush1.msra.mxu0 0.0
    %518 = vmatprep.subr.mxu0 0.0
    %519 = vmatpush1.msra.mxu0 0.0
    %520 = vmatprep.subr.mxu0 0.0
    %521 = vmatpush1.msra.mxu0 0.0
    %522 = vmatprep.subr.mxu0 0.0
    %523 = vmatpush1.msra.mxu0 0.0
    %524 = vmatprep.subr.mxu0 0.0
    %525 = vmatpush1.msra.mxu0 0.0
    %526 = vmatprep.subr.mxu0 0.0
    %527 = vmatpush1.msra.mxu0 0.0
    %528 = vmatprep.subr.mxu0 0.0
    %529 = vmatpush1.msra.mxu0 0.0
    %530 = vmatprep.subr.mxu0 0.0
    %531 = vmatpush1.msra.mxu0 0.0
    %532 = vmatprep.subr.mxu0 0.0
    %533 = vmatpush1.msra.mxu0 0.0
    %534 = vmatprep.subr.mxu0 0.0
    %535 = vmatpush1.msra.mxu0 0.0
    %536 = vmatprep.subr.mxu0 0.0
    %537 = vmatpush1.msra.mxu0 0.0
    %538 = vmatprep.subr.mxu0 0.0
    %539 = vmatpush1.msra.mxu0 0.0
    %540 = vmatprep.subr.mxu0 0.0
    %541 = vmatpush1.msra.mxu0 0.0
    %542 = vmatprep.subr.mxu0 0.0
    %543 = vmatpush1.msra.mxu0 0.0
    %544 = vmatprep.subr.mxu0 0.0
    %545 = vmatpush1.msra.mxu0 0.0
    %546 = vmatprep.subr.mxu0 0.0
    %547 = vmatpush1.msra.mxu0 0.0
    %548 = vmatprep.subr.mxu0 0.0
    %549 = vmatpush1.msra.mxu0 0.0
    %550 = vmatprep.subr.mxu0 0.0
    %551 = vmatpush1.msra.mxu0 0.0
    %552 = vmatprep.subr.mxu0 0.0
    %553 = vmatpush1.msra.mxu0 0.0
    %554 = vmatprep.subr.mxu0 0.0
    %555 = vmatpush1.msra.mxu0 0.0
    %556 = vmatprep.subr.mxu0 0.0
    %557 = vmatpush1.msra.mxu0 0.0
    %558 = vmatprep.subr.mxu0 0.0
    %559 = vmatpush1.msra.mxu0 0.0
    %560 = vmatprep.subr.mxu0 0.0
    %561 = vmatpush1.msra.mxu0 0.0
    %562 = vmatprep.subr.mxu0 0.0
    %563 = vmatpush1.msra.mxu0 0.0
    %564 = vmatprep.mubr.f32.mxu0 0.0
    %565 = vmatmul.mubr.f32.gmra.mrb[0].mxu0 %v495
    %v566 = vpop.f32.mrb[0].mxu0
    %v567 = vadd.f32 0.0, %v566
    %v568 = vpop.f32.mrb[0].mxu0
    %569 = vmatprep.mubr.f32.mxu0 0.0
    %570 = vmatmul.mubr.f32.gmra.mrb[0].mxu0 %v498
    %v571 = vpop.f32.mrb[0].mxu0
    %v572 = vadd.f32 0.0, %v571
    %v573 = vpop.f32.mrb[0].mxu0
    %574 = vdwg.mxu0
    %v576 = vsel %vm189, %v567, 0
    %v579 = vsel %vm189, %v572, 0
    %581 = vmatprep.subr.mxu0 0.0
    %582 = vmatpush1.msra.mxu0 %v82
    %583 = vmatprep.subr.mxu0 0.0
    %584 = vmatpush1.msra.mxu0 0.0
    %585 = vmatprep.subr.mxu0 0.0
    %586 = vmatpush1.msra.mxu0 0.0
    %587 = vmatprep.subr.mxu0 0.0
    %588 = vmatpush1.msra.mxu0 0.0
    %589 = vmatprep.subr.mxu0 0.0
    %590 = vmatpush1.msra.mxu0 0.0
    %591 = vmatprep.subr.mxu0 0.0
    %592 = vmatpush1.msra.mxu0 0.0
    %593 = vmatprep.subr.mxu0 0.0
    %594 = vmatpush1.msra.mxu0 0.0
    %595 = vmatprep.subr.mxu0 0.0
    %596 = vmatpush1.msra.mxu0 0.0
    %597 = vmatprep.subr.mxu0 0.0
    %598 = vmatpush1.msra.mxu0 0.0
    %599 = vmatprep.subr.mxu0 0.0
    %600 = vmatpush1.msra.mxu0 0.0
    %601 = vmatprep.subr.mxu0 0.0
    %602 = vmatpush1.msra.mxu0 0.0
    %603 = vmatprep.subr.mxu0 0.0
    %604 = vmatpush1.msra.mxu0 0.0
    %605 = vmatprep.subr.mxu0 0.0
    %606 = vmatpush1.msra.mxu0 0.0
    %607 = vmatprep.subr.mxu0 0.0
    %608 = vmatpush1.msra.mxu0 0.0
    %609 = vmatprep.subr.mxu0 0.0
    %610 = vmatpush1.msra.mxu0 0.0
    %611 = vmatprep.subr.mxu0 0.0
    %612 = vmatpush1.msra.mxu0 0.0
    %613 = vmatprep.subr.mxu0 0.0
    %614 = vmatpush1.msra.mxu0 0.0
    %615 = vmatprep.subr.mxu0 0.0
    %616 = vmatpush1.msra.mxu0 0.0
    %617 = vmatprep.subr.mxu0 0.0
    %618 = vmatpush1.msra.mxu0 0.0
    %619 = vmatprep.subr.mxu0 0.0
    %620 = vmatpush1.msra.mxu0 0.0
    %621 = vmatprep.subr.mxu0 0.0
    %622 = vmatpush1.msra.mxu0 0.0
    %623 = vmatprep.subr.mxu0 0.0
    %624 = vmatpush1.msra.mxu0 0.0
    %625 = vmatprep.subr.mxu0 0.0
    %626 = vmatpush1.msra.mxu0 0.0
    %627 = vmatprep.subr.mxu0 0.0
    %628 = vmatpush1.msra.mxu0 0.0
    %629 = vmatprep.subr.mxu0 0.0
    %630 = vmatpush1.msra.mxu0 0.0
    %631 = vmatprep.subr.mxu0 0.0
    %632 = vmatpush1.msra.mxu0 0.0
    %633 = vmatprep.subr.mxu0 0.0
    %634 = vmatpush1.msra.mxu0 0.0
    %635 = vmatprep.subr.mxu0 0.0
    %636 = vmatpush1.msra.mxu0 0.0
    %637 = vmatprep.subr.mxu0 0.0
    %638 = vmatpush1.msra.mxu0 0.0
    %639 = vmatprep.subr.mxu0 0.0
    %640 = vmatpush1.msra.mxu0 0.0
    %641 = vmatprep.subr.mxu0 0.0
    %642 = vmatpush1.msra.mxu0 0.0
    %643 = vmatprep.subr.mxu0 0.0
    %644 = vmatpush1.msra.mxu0 0.0
    %645 = vmatprep.mubr.f32.mxu0 0.0
    %646 = vmatmul.mubr.f32.gmra.mrb[0].mxu0 %v576
    %v647 = vpop.f32.mrb[0].mxu0
    %v648 = vadd.f32 0.0, %v647
    %v649 = vpop.f32.mrb[0].mxu0
    %650 = vmatprep.mubr.f32.mxu0 0.0
    %651 = vmatmul.mubr.f32.gmra.mrb[0].mxu0 %v579
    %v652 = vpop.f32.mrb[0].mxu0
    %v653 = vadd.f32 0.0, %v652
    %v654 = vpop.f32.mrb[0].mxu0
    %655 = vdwg.mxu0
    %v657 = vsel %vm189, %v371, 0
    %v660 = vsel %vm189, %v376, 0
    %662 = vmatprep.subr.mxu0 0.0
    %663 = vmatpush1.msra.mxu0 %v81
    %664 = vmatprep.subr.mxu0 0.0
    %665 = vmatpush1.msra.mxu0 0.0
    %666 = vmatprep.subr.mxu0 0.0
    %667 = vmatpush1.msra.mxu0 0.0
    %668 = vmatprep.subr.mxu0 0.0
    %669 = vmatpush1.msra.mxu0 0.0
    %670 = vmatprep.subr.mxu0 0.0
    %671 = vmatpush1.msra.mxu0 0.0
    %672 = vmatprep.subr.mxu0 0.0
    %673 = vmatpush1.msra.mxu0 0.0
    %674 = vmatprep.subr.mxu0 0.0
    %675 = vmatpush1.msra.mxu0 0.0
    %676 = vmatprep.subr.mxu0 0.0
    %677 = vmatpush1.msra.mxu0 0.0
    %678 = vmatprep.subr.mxu0 0.0
    %679 = vmatpush1.msra.mxu0 0.0
    %680 = vmatprep.subr.mxu0 0.0
    %681 = vmatpush1.msra.mxu0 0.0
    %682 = vmatprep.subr.mxu0 0.0
    %683 = vmatpush1.msra.mxu0 0.0
    %684 = vmatprep.subr.mxu0 0.0
    %685 = vmatpush1.msra.mxu0 0.0
    %686 = vmatprep.subr.mxu0 0.0
    %687 = vmatpush1.msra.mxu0 0.0
    %688 = vmatprep.subr.mxu0 0.0
    %689 = vmatpush1.msra.mxu0 0.0
    %690 = vmatprep.subr.mxu0 0.0
    %691 = vmatpush1.msra.mxu0 0.0
    %692 = vmatprep.subr.mxu0 0.0
    %693 = vmatpush1.msra.mxu0 0.0
    %694 = vmatprep.subr.mxu0 0.0
    %695 = vmatpush1.msra.mxu0 0.0
    %696 = vmatprep.subr.mxu0 0.0
    %697 = vmatpush1.msra.mxu0 0.0
    %698 = vmatprep.subr.mxu0 0.0
    %699 = vmatpush1.msra.mxu0 0.0
    %700 = vmatprep.subr.mxu0 0.0
    %701 = vmatpush1.msra.mxu0 0.0
    %702 = vmatprep.subr.mxu0 0.0
    %703 = vmatpush1.msra.mxu0 0.0
    %704 = vmatprep.subr.mxu0 0.0
    %705 = vmatpush1.msra.mxu0 0.0
    %706 = vmatprep.subr.mxu0 0.0
    %707 = vmatpush1.msra.mxu0 0.0
    %708 = vmatprep.subr.mxu0 0.0
    %709 = vmatpush1.msra.mxu0 0.0
    %710 = vmatprep.subr.mxu0 0.0
    %711 = vmatpush1.msra.mxu0 0.0
    %712 = vmatprep.subr.mxu0 0.0
    %713 = vmatpush1.msra.mxu0 0.0
    %714 = vmatprep.subr.mxu0 0.0
    %715 = vmatpush1.msra.mxu0 0.0
    %716 = vmatprep.subr.mxu0 0.0
    %717 = vmatpush1.msra.mxu0 0.0
    %718 = vmatprep.subr.mxu0 0.0
    %719 = vmatpush1.msra.mxu0 0.0
    %720 = vmatprep.subr.mxu0 0.0
    %721 = vmatpush1.msra.mxu0 0.0
    %722 = vmatprep.subr.mxu0 0.0
    %723 = vmatpush1.msra.mxu0 0.0
    %724 = vmatprep.subr.mxu0 0.0
    %725 = vmatpush1.msra.mxu0 0.0
    %726 = vmatprep.mubr.f32.mxu0 0.0
    %727 = vmatmul.mubr.f32.gmra.mrb[0].mxu0 %v657
    %v728 = vpop.f32.mrb[0].mxu0
    %v729 = vadd.f32 %v648, %v728
    %v730 = vpop.f32.mrb[0].mxu0
    %731 = vmatprep.mubr.f32.mxu0 0.0
    %732 = vmatmul.mubr.f32.gmra.mrb[0].mxu0 %v660
    %v733 = vpop.f32.mrb[0].mxu0
    %v734 = vadd.f32 %v653, %v733
    %v735 = vpop.f32.mrb[0].mxu0
    %736 = vdwg.mxu0
    %737 = vrot.lane.b32.xlu0 %v175, 112
    %v738 = vpop.permute.xlu0 %737
    %739 = vrot.lane.b32.xlu0 %v180, 112
    %v740 = vpop.permute.xlu0 %739
    %741 = vrot.lane.b32.xlu0 %v175, 80
    %v742 = vpop.permute.xlu0 %741
    %743 = vrot.lane.b32.xlu0 %v180, 80
    %v744 = vpop.permute.xlu0 %743
    %v745 = vsel %vm189, %v738, 0
    %v747 = vsel %vm189, %v740, 0
    %v749 = vsel %vm189, %v742, 0
    %v751 = vsel %vm189, %v744, 0
    %753 = vmatprep.subr.mxu0 0.0
    %754 = vmatpush1.xpose.msra.mxu0 %v749
    %755 = vmatprep.subr.mxu0 0.0
    %756 = vmatpush1.xpose.msra.mxu0 %v751
    %757 = vmatprep.subr.mxu0 0.0
    %758 = vmatpush1.xpose.msra.mxu0 0.0
    %759 = vmatprep.subr.mxu0 0.0
    %760 = vmatpush1.xpose.msra.mxu0 0.0
    %761 = vmatprep.subr.mxu0 0.0
    %762 = vmatpush1.xpose.msra.mxu0 0.0
    %763 = vmatprep.subr.mxu0 0.0
    %764 = vmatpush1.xpose.msra.mxu0 0.0
    %765 = vmatprep.subr.mxu0 0.0
    %766 = vmatpush1.xpose.msra.mxu0 0.0
    %767 = vmatprep.subr.mxu0 0.0
    %768 = vmatpush1.xpose.msra.mxu0 0.0
    %769 = vmatprep.subr.mxu0 0.0
    %770 = vmatpush1.xpose.msra.mxu0 0.0
    %771 = vmatprep.subr.mxu0 0.0
    %772 = vmatpush1.xpose.msra.mxu0 0.0
    %773 = vmatprep.subr.mxu0 0.0
    %774 = vmatpush1.xpose.msra.mxu0 0.0
    %775 = vmatprep.subr.mxu0 0.0
    %776 = vmatpush1.xpose.msra.mxu0 0.0
    %777 = vmatprep.subr.mxu0 0.0
    %778 = vmatpush1.xpose.msra.mxu0 0.0
    %779 = vmatprep.subr.mxu0 0.0
    %780 = vmatpush1.xpose.msra.mxu0 0.0
    %781 = vmatprep.subr.mxu0 0.0
    %782 = vmatpush1.xpose.msra.mxu0 0.0
    %783 = vmatprep.subr.mxu0 0.0
    %784 = vmatpush1.xpose.msra.mxu0 0.0
    %785 = vmatprep.subr.mxu0 0.0
    %786 = vmatpush1.xpose.msra.mxu0 0.0
    %787 = vmatprep.subr.mxu0 0.0
    %788 = vmatpush1.xpose.msra.mxu0 0.0
    %789 = vmatprep.subr.mxu0 0.0
    %790 = vmatpush1.xpose.msra.mxu0 0.0
    %791 = vmatprep.subr.mxu0 0.0
    %792 = vmatpush1.xpose.msra.mxu0 0.0
    %793 = vmatprep.subr.mxu0 0.0
    %794 = vmatpush1.xpose.msra.mxu0 0.0
    %795 = vmatprep.subr.mxu0 0.0
    %796 = vmatpush1.xpose.msra.mxu0 0.0
    %797 = vmatprep.subr.mxu0 0.0
    %798 = vmatpush1.xpose.msra.mxu0 0.0
    %799 = vmatprep.subr.mxu0 0.0
    %800 = vmatpush1.xpose.msra.mxu0 0.0
    %801 = vmatprep.subr.mxu0 0.0
    %802 = vmatpush1.xpose.msra.mxu0 0.0
    %803 = vmatprep.subr.mxu0 0.0
    %804 = vmatpush1.xpose.msra.mxu0 0.0
    %805 = vmatprep.subr.mxu0 0.0
    %806 = vmatpush1.xpose.msra.mxu0 0.0
    %807 = vmatprep.subr.mxu0 0.0
    %808 = vmatpush1.xpose.msra.mxu0 0.0
    %809 = vmatprep.subr.mxu0 0.0
    %810 = vmatpush1.xpose.msra.mxu0 0.0
    %811 = vmatprep.subr.mxu0 0.0
    %812 = vmatpush1.xpose.msra.mxu0 0.0
    %813 = vmatprep.subr.mxu0 0.0
    %814 = vmatpush1.xpose.msra.mxu0 0.0
    %815 = vmatprep.subr.mxu0 0.0
    %816 = vmatpush1.xpose.msra.mxu0 0.0
    %817 = vmatprep.mubr.f32.mxu0 0.0
    %818 = vmatmul.mubr.f32.gmra.mrb[0].mxu0 %v745
    %v819 = vpop.f32.mrb[0].mxu0
    %v820 = vadd.f32 0.0, %v819
    %v821 = vpop.f32.mrb[0].mxu0
    %822 = vmatprep.mubr.f32.mxu0 0.0
    %823 = vmatmul.mubr.f32.gmra.mrb[0].mxu0 %v747
    %v824 = vpop.f32.mrb[0].mxu0
    %v825 = vadd.f32 0.0, %v824
    %v826 = vpop.f32.mrb[0].mxu0
    %827 = vdwg.mxu0
    %v828 = vmul.f32 %v820, 0.35355338
    %v829 = vmul.f32 %v825, 0.35355338
    %v830 = vadd.f32 %v828, %v78
    %v831 = vadd.f32 %v829, %v79
    %v832 = vmul.f32 %v830, 1.442695
    %v833 = vpow.pop %v832
    %v834 = vmul.f32 %v831, 1.442695
    %v835 = vpow.pop %v834
    %v836 = vsel %vm281, %v833, 0.0
    %837 = vadd.xlane.f32.xlu0 %v836
    %v838 = vpop.xlane.xlu0 %837
    %v839 = vsel %vm281, %v835, 0.0
    %840 = vadd.xlane.f32.xlu0 %v839
    %v841 = vpop.xlane.xlu0 %840
    %v842 = vrcp.pop %v838
    %v843 = vmul.f32 %v833, %v842
    %v844 = vrcp.pop %v841
    %v845 = vmul.f32 %v835, %v844
    %846 = vrot.lane.b32.xlu0 %v175, 48
    %v847 = vpop.permute.xlu0 %846
    %848 = vrot.lane.b32.xlu0 %v180, 48
    %v849 = vpop.permute.xlu0 %848
    %v853 = vsel %vm281, %v843, 0
    %v856 = vsel %vm281, %v845, 0
    %858 = vmatprep.subr.mxu0 0.0
    %859 = vmatpush1.msra.mxu0 %v847
    %860 = vmatprep.subr.mxu0 0.0
    %861 = vmatpush1.msra.mxu0 %v849
    %862 = vmatprep.subr.mxu0 0.0
    %863 = vmatpush1.msra.mxu0 0.0
    %864 = vmatprep.subr.mxu0 0.0
    %865 = vmatpush1.msra.mxu0 0.0
    %866 = vmatprep.subr.mxu0 0.0
    %867 = vmatpush1.msra.mxu0 0.0
    %868 = vmatprep.subr.mxu0 0.0
    %869 = vmatpush1.msra.mxu0 0.0
    %870 = vmatprep.subr.mxu0 0.0
    %871 = vmatpush1.msra.mxu0 0.0
    %872 = vmatprep.subr.mxu0 0.0
    %873 = vmatpush1.msra.mxu0 0.0
    %874 = vmatprep.subr.mxu0 0.0
    %875 = vmatpush1.msra.mxu0 0.0
    %876 = vmatprep.subr.mxu0 0.0
    %877 = vmatpush1.msra.mxu0 0.0
    %878 = vmatprep.subr.mxu0 0.0
    %879 = vmatpush1.msra.mxu0 0.0
    %880 = vmatprep.subr.mxu0 0.0
    %881 = vmatpush1.msra.mxu0 0.0
    %882 = vmatprep.subr.mxu0 0.0
    %883 = vmatpush1.msra.mxu0 0.0
    %884 = vmatprep.subr.mxu0 0.0
    %885 = vmatpush1.msra.mxu0 0.0
    %886 = vmatprep.subr.mxu0 0.0
    %887 = vmatpush1.msra.mxu0 0.0
    %888 = vmatprep.subr.mxu0 0.0
    %889 = vmatpush1.msra.mxu0 0.0
    %890 = vmatprep.subr.mxu0 0.0
    %891 = vmatpush1.msra.mxu0 0.0
    %892 = vmatprep.subr.mxu0 0.0
    %893 = vmatpush1.msra.mxu0 0.0
    %894 = vmatprep.subr.mxu0 0.0
    %895 = vmatpush1.msra.mxu0 0.0
    %896 = vmatprep.subr.mxu0 0.0
    %897 = vmatpush1.msra.mxu0 0.0
    %898 = vmatprep.subr.mxu0 0.0
    %899 = vmatpush1.msra.mxu0 0.0
    %900 = vmatprep.subr.mxu0 0.0
    %901 = vmatpush1.msra.mxu0 0.0
    %902 = vmatprep.subr.mxu0 0.0
    %903 = vmatpush1.msra.mxu0 0.0
    %904 = vmatprep.subr.mxu0 0.0
    %905 = vmatpush1.msra.mxu0 0.0
    %906 = vmatprep.subr.mxu0 0.0
    %907 = vmatpush1.msra.mxu0 0.0
    %908 = vmatprep.subr.mxu0 0.0
    %909 = vmatpush1.msra.mxu0 0.0
    %910 = vmatprep.subr.mxu0 0.0
    %911 = vmatpush1.msra.mxu0 0.0
    %912 = vmatprep.subr.mxu0 0.0
    %913 = vmatpush1.msra.mxu0 0.0
    %914 = vmatprep.subr.mxu0 0.0
    %915 = vmatpush1.msra.mxu0 0.0
    %916 = vmatprep.subr.mxu0 0.0
    %917 = vmatpush1.msra.mxu0 0.0
    %918 = vmatprep.subr.mxu0 0.0
    %919 = vmatpush1.msra.mxu0 0.0
    %920 = vmatprep.subr.mxu0 0.0
    %921 = vmatpush1.msra.mxu0 0.0
    %922 = vmatprep.mubr.f32.mxu0 0.0
    %923 = vmatmul.mubr.f32.gmra.mrb[0].mxu0 %v853
    %v924 = vpop.f32.mrb[0].mxu0
    %v925 = vadd.f32 0.0, %v924
    %v926 = vpop.f32.mrb[0].mxu0
    %927 = vmatprep.mubr.f32.mxu0 0.0
    %928 = vmatmul.mubr.f32.gmra.mrb[0].mxu0 %v856
    %v929 = vpop.f32.mrb[0].mxu0
    %v930 = vadd.f32 0.0, %v929
    %v931 = vpop.f32.mrb[0].mxu0
    %932 = vdwg.mxu0
    %v934 = vsel %vm189, %v925, 0
    %v937 = vsel %vm189, %v930, 0
    %939 = vmatprep.subr.mxu0 0.0
    %940 = vmatpush1.msra.mxu0 %v83
    %941 = vmatprep.subr.mxu0 0.0
    %942 = vmatpush1.msra.mxu0 0.0
    %943 = vmatprep.subr.mxu0 0.0
    %944 = vmatpush1.msra.mxu0 0.0
    %945 = vmatprep.subr.mxu0 0.0
    %946 = vmatpush1.msra.mxu0 0.0
    %947 = vmatprep.subr.mxu0 0.0
    %948 = vmatpush1.msra.mxu0 0.0
    %949 = vmatprep.subr.mxu0 0.0
    %950 = vmatpush1.msra.mxu0 0.0
    %951 = vmatprep.subr.mxu0 0.0
    %952 = vmatpush1.msra.mxu0 0.0
    %953 = vmatprep.subr.mxu0 0.0
    %954 = vmatpush1.msra.mxu0 0.0
    %955 = vmatprep.subr.mxu0 0.0
    %956 = vmatpush1.msra.mxu0 0.0
    %957 = vmatprep.subr.mxu0 0.0
    %958 = vmatpush1.msra.mxu0 0.0
    %959 = vmatprep.subr.mxu0 0.0
    %960 = vmatpush1.msra.mxu0 0.0
    %961 = vmatprep.subr.mxu0 0.0
    %962 = vmatpush1.msra.mxu0 0.0
    %963 = vmatprep.subr.mxu0 0.0
    %964 = vmatpush1.msra.mxu0 0.0
    %965 = vmatprep.subr.mxu0 0.0
    %966 = vmatpush1.msra.mxu0 0.0
    %967 = vmatprep.subr.mxu0 0.0
    %968 = vmatpush1.msra.mxu0 0.0
    %969 = vmatprep.subr.mxu0 0.0
    %970 = vmatpush1.msra.mxu0 0.0
    %971 = vmatprep.subr.mxu0 0.0
    %972 = vmatpush1.msra.mxu0 0.0
    %973 = vmatprep.subr.mxu0 0.0
    %974 = vmatpush1.msra.mxu0 0.0
    %975 = vmatprep.subr.mxu0 0.0
    %976 = vmatpush1.msra.mxu0 0.0
    %977 = vmatprep.subr.mxu0 0.0
    %978 = vmatpush1.msra.mxu0 0.0
    %979 = vmatprep.subr.mxu0 0.0
    %980 = vmatpush1.msra.mxu0 0.0
    %981 = vmatprep.subr.mxu0 0.0
    %982 = vmatpush1.msra.mxu0 0.0
    %983 = vmatprep.subr.mxu0 0.0
    %984 = vmatpush1.msra.mxu0 0.0
    %985 = vmatprep.subr.mxu0 0.0
    %986 = vmatpush1.msra.mxu0 0.0
    %987 = vmatprep.subr.mxu0 0.0
    %988 = vmatpush1.msra.mxu0 0.0
    %989 = vmatprep.subr.mxu0 0.0
    %990 = vmatpush1.msra.mxu0 0.0
    %991 = vmatprep.subr.mxu0 0.0
    %992 = vmatpush1.msra.mxu0 0.0
    %993 = vmatprep.subr.mxu0 0.0
    %994 = vmatpush1.msra.mxu0 0.0
    %995 = vmatprep.subr.mxu0 0.0
    %996 = vmatpush1.msra.mxu0 0.0
    %997 = vmatprep.subr.mxu0 0.0
    %998 = vmatpush1.msra.mxu0 0.0
    %999 = vmatprep.subr.mxu0 0.0
    %1000 = vmatpush1.msra.mxu0 0.0
    %1001 = vmatprep.subr.mxu0 0.0
    %1002 = vmatpush1.msra.mxu0 0.0
    %1003 = vmatprep.mubr.f32.mxu0 0.0
    %1004 = vmatmul.mubr.f32.gmra.mrb[0].mxu0 %v934
    %v1005 = vpop.f32.mrb[0].mxu0
    %v1006 = vadd.f32 0.0, %v1005
    %v1007 = vpop.f32.mrb[0].mxu0
    %1008 = vmatprep.mubr.f32.mxu0 0.0
    %1009 = vmatmul.mubr.f32.gmra.mrb[0].mxu0 %v937
    %v1010 = vpop.f32.mrb[0].mxu0
    %v1011 = vadd.f32 0.0, %v1010
    %v1012 = vpop.f32.mrb[0].mxu0
    %1013 = vdwg.mxu0
    %v1014 = vadd.f32 %v729, %v1006
    %v1015 = vadd.f32 %v734, %v1011
    %1016 = vrot.lane.b32.xlu0 %v175, 104
    %v1017 = vpop.permute.xlu0 %1016
    %1018 = vrot.lane.b32.xlu0 %v180, 104
    %v1019 = vpop.permute.xlu0 %1018
    %1020 = vrot.lane.b32.xlu0 %v175, 72
    %v1021 = vpop.permute.xlu0 %1020
    %1022 = vrot.lane.b32.xlu0 %v180, 72
    %v1023 = vpop.permute.xlu0 %1022
    %v1024 = vsel %vm189, %v1017, 0
    %v1026 = vsel %vm189, %v1019, 0
    %v1028 = vsel %vm189, %v1021, 0
    %v1030 = vsel %vm189, %v1023, 0
    %1032 = vmatprep.subr.mxu0 0.0
    %1033 = vmatpush1.xpose.msra.mxu0 %v1028
    %1034 = vmatprep.subr.mxu0 0.0
    %1035 = vmatpush1.xpose.msra.mxu0 %v1030
    %1036 = vmatprep.subr.mxu0 0.0
    %1037 = vmatpush1.xpose.msra.mxu0 0.0
    %1038 = vmatprep.subr.mxu0 0.0
    %1039 = vmatpush1.xpose.msra.mxu0 0.0
    %1040 = vmatprep.subr.mxu0 0.0
    %1041 = vmatpush1.xpose.msra.mxu0 0.0
    %1042 = vmatprep.subr.mxu0 0.0
    %1043 = vmatpush1.xpose.msra.mxu0 0.0
    %1044 = vmatprep.subr.mxu0 0.0
    %1045 = vmatpush1.xpose.msra.mxu0 0.0
    %1046 = vmatprep.subr.mxu0 0.0
    %1047 = vmatpush1.xpose.msra.mxu0 0.0
    %1048 = vmatprep.subr.mxu0 0.0
    %1049 = vmatpush1.xpose.msra.mxu0 0.0
    %1050 = vmatprep.subr.mxu0 0.0
    %1051 = vmatpush1.xpose.msra.mxu0 0.0
    %1052 = vmatprep.subr.mxu0 0.0
    %1053 = vmatpush1.xpose.msra.mxu0 0.0
    %1054 = vmatprep.subr.mxu0 0.0
    %1055 = vmatpush1.xpose.msra.mxu0 0.0
    %1056 = vmatprep.subr.mxu0 0.0
    %1057 = vmatpush1.xpose.msra.mxu0 0.0
    %1058 = vmatprep.subr.mxu0 0.0
    %1059 = vmatpush1.xpose.msra.mxu0 0.0
    %1060 = vmatprep.subr.mxu0 0.0
    %1061 = vmatpush1.xpose.msra.mxu0 0.0
    %1062 = vmatprep.subr.mxu0 0.0
    %1063 = vmatpush1.xpose.msra.mxu0 0.0
    %1064 = vmatprep.subr.mxu0 0.0
    %1065 = vmatpush1.xpose.msra.mxu0 0.0
    %1066 = vmatprep.subr.mxu0 0.0
    %1067 = vmatpush1.xpose.msra.mxu0 0.0
    %1068 = vmatprep.subr.mxu0 0.0
    %1069 = vmatpush1.xpose.msra.mxu0 0.0
    %1070 = vmatprep.subr.mxu0 0.0
    %1071 = vmatpush1.xpose.msra.mxu0 0.0
    %1072 = vmatprep.subr.mxu0 0.0
    %1073 = vmatpush1.xpose.msra.mxu0 0.0
    %1074 = vmatprep.subr.mxu0 0.0
    %1075 = vmatpush1.xpose.msra.mxu0 0.0
    %1076 = vmatprep.subr.mxu0 0.0
    %1077 = vmatpush1.xpose.msra.mxu0 0.0
    %1078 = vmatprep.subr.mxu0 0.0
    %1079 = vmatpush1.xpose.msra.mxu0 0.0
    %1080 = vmatprep.subr.mxu0 0.0
    %1081 = vmatpush1.xpose.msra.mxu0 0.0
    %1082 = vmatprep.subr.mxu0 0.0
    %1083 = vmatpush1.xpose.msra.mxu0 0.0
    %1084 = vmatprep.subr.mxu0 0.0
    %1085 = vmatpush1.xpose.msra.mxu0 0.0
    %1086 = vmatprep.subr.mxu0 0.0
    %1087 = vmatpush1.xpose.msra.mxu0 0.0
    %1088 = vmatprep.subr.mxu0 0.0
    %1089 = vmatpush1.xpose.msra.mxu0 0.0
    %1090 = vmatprep.subr.mxu0 0.0
    %1091 = vmatpush1.xpose.msra.mxu0 0.0
    %1092 = vmatprep.subr.mxu0 0.0
    %1093 = vmatpush1.xpose.msra.mxu0 0.0
    %1094 = vmatprep.subr.mxu0 0.0
    %1095 = vmatpush1.xpose.msra.mxu0 0.0
    %1096 = vmatprep.mubr.f32.mxu0 0.0
    %1097 = vmatmul.mubr.f32.gmra.mrb[0].mxu0 %v1024
    %v1098 = vpop.f32.mrb[0].mxu0
    %v1099 = vadd.f32 0.0, %v1098
    %v1100 = vpop.f32.mrb[0].mxu0
    %1101 = vmatprep.mubr.f32.mxu0 0.0
    %1102 = vmatmul.mubr.f32.gmra.mrb[0].mxu0 %v1026
    %v1103 = vpop.f32.mrb[0].mxu0
    %v1104 = vadd.f32 0.0, %v1103
    %v1105 = vpop.f32.mrb[0].mxu0
    %1106 = vdwg.mxu0
    %v1107 = vmul.f32 %v1099, 0.35355338
    %v1108 = vmul.f32 %v1104, 0.35355338
    %v1109 = vadd.f32 %v1107, %v78
    %v1110 = vadd.f32 %v1108, %v79
    %v1111 = vmul.f32 %v1109, 1.442695
    %v1112 = vpow.pop %v1111
    %v1113 = vmul.f32 %v1110, 1.442695
    %v1114 = vpow.pop %v1113
    %v1115 = vsel %vm281, %v1112, 0.0
    %1116 = vadd.xlane.f32.xlu0 %v1115
    %v1117 = vpop.xlane.xlu0 %1116
    %v1118 = vsel %vm281, %v1114, 0.0
    %1119 = vadd.xlane.f32.xlu0 %v1118
    %v1120 = vpop.xlane.xlu0 %1119
    %v1121 = vrcp.pop %v1117
    %v1122 = vmul.f32 %v1112, %v1121
    %v1123 = vrcp.pop %v1120
    %v1124 = vmul.f32 %v1114, %v1123
    %1125 = vrot.lane.b32.xlu0 %v175, 40
    %v1126 = vpop.permute.xlu0 %1125
    %1127 = vrot.lane.b32.xlu0 %v180, 40
    %v1128 = vpop.permute.xlu0 %1127
    %v1132 = vsel %vm281, %v1122, 0
    %v1135 = vsel %vm281, %v1124, 0
    %1137 = vmatprep.subr.mxu0 0.0
    %1138 = vmatpush1.msra.mxu0 %v1126
    %1139 = vmatprep.subr.mxu0 0.0
    %1140 = vmatpush1.msra.mxu0 %v1128
    %1141 = vmatprep.subr.mxu0 0.0
    %1142 = vmatpush1.msra.mxu0 0.0
    %1143 = vmatprep.subr.mxu0 0.0
    %1144 = vmatpush1.msra.mxu0 0.0
    %1145 = vmatprep.subr.mxu0 0.0
    %1146 = vmatpush1.msra.mxu0 0.0
    %1147 = vmatprep.subr.mxu0 0.0
    %1148 = vmatpush1.msra.mxu0 0.0
    %1149 = vmatprep.subr.mxu0 0.0
    %1150 = vmatpush1.msra.mxu0 0.0
    %1151 = vmatprep.subr.mxu0 0.0
    %1152 = vmatpush1.msra.mxu0 0.0
    %1153 = vmatprep.subr.mxu0 0.0
    %1154 = vmatpush1.msra.mxu0 0.0
    %1155 = vmatprep.subr.mxu0 0.0
    %1156 = vmatpush1.msra.mxu0 0.0
    %1157 = vmatprep.subr.mxu0 0.0
    %1158 = vmatpush1.msra.mxu0 0.0
    %1159 = vmatprep.subr.mxu0 0.0
    %1160 = vmatpush1.msra.mxu0 0.0
    %1161 = vmatprep.subr.mxu0 0.0
    %1162 = vmatpush1.msra.mxu0 0.0
    %1163 = vmatprep.subr.mxu0 0.0
    %1164 = vmatpush1.msra.mxu0 0.0
    %1165 = vmatprep.subr.mxu0 0.0
    %1166 = vmatpush1.msra.mxu0 0.0
    %1167 = vmatprep.subr.mxu0 0.0
    %1168 = vmatpush1.msra.mxu0 0.0
    %1169 = vmatprep.subr.mxu0 0.0
    %1170 = vmatpush1.msra.mxu0 0.0
    %1171 = vmatprep.subr.mxu0 0.0
    %1172 = vmatpush1.msra.mxu0 0.0
    %1173 = vmatprep.subr.mxu0 0.0
    %1174 = vmatpush1.msra.mxu0 0.0
    %1175 = vmatprep.subr.mxu0 0.0
    %1176 = vmatpush1.msra.mxu0 0.0
    %1177 = vmatprep.subr.mxu0 0.0
    %1178 = vmatpush1.msra.mxu0 0.0
    %1179 = vmatprep.subr.mxu0 0.0
    %1180 = vmatpush1.msra.mxu0 0.0
    %1181 = vmatprep.subr.mxu0 0.0
    %1182 = vmatpush1.msra.mxu0 0.0
    %1183 = vmatprep.subr.mxu0 0.0
    %1184 = vmatpush1.msra.mxu0 0.0
    %1185 = vmatprep.subr.mxu0 0.0
    %1186 = vmatpush1.msra.mxu0 0.0
    %1187 = vmatprep.subr.mxu0 0.0
    %1188 = vmatpush1.msra.mxu0 0.0
    %1189 = vmatprep.subr.mxu0 0.0
    %1190 = vmatpush1.msra.mxu0 0.0
    %1191 = vmatprep.subr.mxu0 0.0
    %1192 = vmatpush1.msra.mxu0 0.0
    %1193 = vmatprep.subr.mxu0 0.0
    %1194 = vmatpush1.msra.mxu0 0.0
    %1195 = vmatprep.subr.mxu0 0.0
    %1196 = vmatpush1.msra.mxu0 0.0
    %1197 = vmatprep.subr.mxu0 0.0
    %1198 = vmatpush1.msra.mxu0 0.0
    %1199 = vmatprep.subr.mxu0 0.0
    %1200 = vmatpush1.msra.mxu0 0.0
    %1201 = vmatprep.mubr.f32.mxu0 0.0
    %1202 = vmatmul.mubr.f32.gmra.mrb[0].mxu0 %v1132
    %v1203 = vpop.f32.mrb[0].mxu0
    %v1204 = vadd.f32 0.0, %v1203
    %v1205 = vpop.f32.mrb[0].mxu0
    %1206 = vmatprep.mubr.f32.mxu0 0.0
    %1207 = vmatmul.mubr.f32.gmra.mrb[0].mxu0 %v1135
    %v1208 = vpop.f32.mrb[0].mxu0
    %v1209 = vadd.f32 0.0, %v1208
    %v1210 = vpop.f32.mrb[0].mxu0
    %1211 = vdwg.mxu0
    %v1213 = vsel %vm189, %v1204, 0
    %v1216 = vsel %vm189, %v1209, 0
    %1218 = vmatprep.subr.mxu0 0.0
    %1219 = vmatpush1.msra.mxu0 %v84
    %1220 = vmatprep.subr.mxu0 0.0
    %1221 = vmatpush1.msra.mxu0 0.0
    %1222 = vmatprep.subr.mxu0 0.0
    %1223 = vmatpush1.msra.mxu0 0.0
    %1224 = vmatprep.subr.mxu0 0.0
    %1225 = vmatpush1.msra.mxu0 0.0
    %1226 = vmatprep.subr.mxu0 0.0
    %1227 = vmatpush1.msra.mxu0 0.0
    %1228 = vmatprep.subr.mxu0 0.0
    %1229 = vmatpush1.msra.mxu0 0.0
    %1230 = vmatprep.subr.mxu0 0.0
    %1231 = vmatpush1.msra.mxu0 0.0
    %1232 = vmatprep.subr.mxu0 0.0
    %1233 = vmatpush1.msra.mxu0 0.0
    %1234 = vmatprep.subr.mxu0 0.0
    %1235 = vmatpush1.msra.mxu0 0.0
    %1236 = vmatprep.subr.mxu0 0.0
    %1237 = vmatpush1.msra.mxu0 0.0
    %1238 = vmatprep.subr.mxu0 0.0
    %1239 = vmatpush1.msra.mxu0 0.0
    %1240 = vmatprep.subr.mxu0 0.0
    %1241 = vmatpush1.msra.mxu0 0.0
    %1242 = vmatprep.subr.mxu0 0.0
    %1243 = vmatpush1.msra.mxu0 0.0
    %1244 = vmatprep.subr.mxu0 0.0
    %1245 = vmatpush1.msra.mxu0 0.0
    %1246 = vmatprep.subr.mxu0 0.0
    %1247 = vmatpush1.msra.mxu0 0.0
    %1248 = vmatprep.subr.mxu0 0.0
    %1249 = vmatpush1.msra.mxu0 0.0
    %1250 = vmatprep.subr.mxu0 0.0
    %1251 = vmatpush1.msra.mxu0 0.0
    %1252 = vmatprep.subr.mxu0 0.0
    %1253 = vmatpush1.msra.mxu0 0.0
    %1254 = vmatprep.subr.mxu0 0.0
    %1255 = vmatpush1.msra.mxu0 0.0
    %1256 = vmatprep.subr.mxu0 0.0
    %1257 = vmatpush1.msra.mxu0 0.0
    %1258 = vmatprep.subr.mxu0 0.0
    %1259 = vmatpush1.msra.mxu0 0.0
    %1260 = vmatprep.subr.mxu0 0.0
    %1261 = vmatpush1.msra.mxu0 0.0
    %1262 = vmatprep.subr.mxu0 0.0
    %1263 = vmatpush1.msra.mxu0 0.0
    %1264 = vmatprep.subr.mxu0 0.0
    %1265 = vmatpush1.msra.mxu0 0.0
    %1266 = vmatprep.subr.mxu0 0.0
    %1267 = vmatpush1.msra.mxu0 0.0
    %1268 = vmatprep.subr.mxu0 0.0
    %1269 = vmatpush1.msra.mxu0 0.0
    %1270 = vmatprep.subr.mxu0 0.0
    %1271 = vmatpush1.msra.mxu0 0.0
    %1272 = vmatprep.subr.mxu0 0.0
    %1273 = vmatpush1.msra.mxu0 0.0
    %1274 = vmatprep.subr.mxu0 0.0
    %1275 = vmatpush1.msra.mxu0 0.0
    %1276 = vmatprep.subr.mxu0 0.0
    %1277 = vmatpush1.msra.mxu0 0.0
    %1278 = vmatprep.subr.mxu0 0.0
    %1279 = vmatpush1.msra.mxu0 0.0
    %1280 = vmatprep.subr.mxu0 0.0
    %1281 = vmatpush1.msra.mxu0 0.0
    %1282 = vmatprep.mubr.f32.mxu0 0.0
    %1283 = vmatmul.mubr.f32.gmra.mrb[0].mxu0 %v1213
    %v1284 = vpop.f32.mrb[0].mxu0
    %v1285 = vadd.f32 0.0, %v1284
    %v1286 = vpop.f32.mrb[0].mxu0
    %1287 = vmatprep.mubr.f32.mxu0 0.0
    %1288 = vmatmul.mubr.f32.gmra.mrb[0].mxu0 %v1216
    %v1289 = vpop.f32.mrb[0].mxu0
    %v1290 = vadd.f32 0.0, %v1289
    %v1291 = vpop.f32.mrb[0].mxu0
    %1292 = vdwg.mxu0
    %v1293 = vadd.f32 %v1014, %v1285
    %v1294 = vadd.f32 %v1015, %v1290
    %v1295 = vlaneseq
    %v1296 = vshrl.u32 %v1295, 7
    %v1297 = vsub.s32 1, %v1296
    %v1298 = vrot.slane %v80, %v1297
    %v1299 = vadd.f32 %v1293, %v1298
    %v1300 = vadd.f32 %v1294, %v1298
    %vm1301 = vcmask 261120
    %1302 = vst.msk [vmem:[#allocation10] sm:$0xff] %vm1301, %v1299
    %1303 = vst.msk [vmem:[#allocation10 + $0x8] sm:$0xff] %vm1301, %v1300
    // Predicated region
    $region38: #{tpu_custom_call.1} parent=1 // pred_check
      _
    $region39: #{tpu_custom_call.1} parent=1 // pred_check_branch
      %1305 = sbr.rel (0) target = $region41
    $region40: #{tpu_custom_call.1} parent=1 // pred_region
      %s1307 = ssub.s32 256, 256
      %1308 = vsyncadd [#allocation4], %s1307
      %s1309 = sshll.u32 [#allocation10], 4
      %s1310 = int_to_ptr.vmem [resolvable:$true] %s1309
      %1315 = dma.vmem_to_hbm [thread:$0]  %s1310, 256, %s5, [#allocation4], 128, 128, 8
    $region41: #{tpu_custom_call.1} parent=1 // pred_fallthru
      _
    // Predicated region
    $region42: #{tpu_custom_call.1} parent=1 // pred_check
      _
    $region43: #{tpu_custom_call.1} parent=1 // pred_check_branch
      %1317 = sbr.rel (0) target = $region45
    $region44: #{tpu_custom_call.1} parent=1 // pred_region
      %1318 = dma.done [#allocation4], 256
    $region45: #{tpu_custom_call.1} parent=1 // pred_fallthru
      _
    %1319 = vsyncpa [#allocation3], 1
    %1320 = vsyncpa [#allocation6], 1
    %1321 = vsyncpa [#allocation9], 1
    %1322 = vsyncpa [#allocation4], 1

</llo_original>
